<compile_context>
chip_gen: v7x
topology: tpu7x:2x2x1
jax: 0.10.0
libtpu: 0.0.40
codegen_flags: <defaults>
</compile_context>

<pallas_src>
import functools
import math

import jax
import jax.numpy as jnp
import numpy as np
from jax import lax
from jax.experimental import pallas as pl
from jax.experimental.pallas import tpu as pltpu


def _vdiffusion_kernel(coef_ref, x_ref, n_ref, w_ref, bias_ref, part_ref,
                       *, t_true, tblk, mask_cols):
    # coef_ref : (3, B)  SMEM  rows = [alpha, beta, sigma]
    # x_ref    : (C, tblk)     bf16 (or f32) block of x   (batch b, lane block j)
    # n_ref    : (C, tblk)     bf16 (or f32) block of noise
    # w_ref    : (C, C)        f32 pointwise conv weight (resident)
    # bias_ref : (C, 1)        f32 pointwise conv bias   (resident)
    # part_ref : (8, 128)      f32 per-block partial sum of squared error
    b = pl.program_id(0)
    j = pl.program_id(1)

    alpha = coef_ref[0, b]
    beta = coef_ref[1, b]
    sigma = coef_ref[2, b]

    x = x_ref[...].astype(jnp.float32)        # upcast right after load
    n = n_ref[...].astype(jnp.float32)

    x_noisy = alpha * x + beta * n            # (C, tblk)  VPU
    v_target = alpha * n - beta * x           # (C, tblk)  VPU

    # synthetic net: pointwise Conv1d(C, C, 1) + bias + sigma conditioning
    v_pred = (
        jnp.dot(w_ref[...], x_noisy, preferred_element_type=jnp.float32)  # MXU
        + bias_ref[...]                       # (C, 1) broadcast over lanes
        + sigma                               # scalar broadcast
    )

    diff = v_pred - v_target
    d2 = diff * diff

    if mask_cols:
        # Zero contributions from padded columns (v_pred = bias + sigma there,
        # so they are NOT neutral and must be masked).
        col = j * tblk + lax.broadcasted_iota(jnp.int32, (1, tblk), 1)
        d2 = jnp.where(col < t_true, d2, 0.0)

    # Reduce fully inside the kernel: sublane (C) reduce, then fold lane
    # groups of 128 and reduce again -> one (1, 128) row per block.
    row = jnp.sum(d2, axis=0, keepdims=True)               # (1, tblk)
    folded = row.reshape(tblk // 128, 128)                  # (ng, 128)
    part128 = jnp.sum(folded, axis=0, keepdims=True)        # (1, 128)
    # Replicate scaled by 1/8 across the 8 sublanes: the external jnp.sum over
    # all 8 rows reproduces the exact block sum (power-of-two scale), while
    # the store stays a full unmasked (8, 128) tile.
    part_ref[...] = jnp.broadcast_to(part128 * 0.125, (8, 128))


def _pick_block(t, cap=32768, min_block=512):
    """Choose (lane_block, padded_T). lane_block is a multiple of 128 <= cap."""
    tpad128 = ((t + 127) // 128) * 128
    if tpad128 <= cap:
        return tpad128, tpad128                 # one (padded) block per batch row
    top = (cap // 128) * 128
    for cand in range(top, min_block - 1, -128):  # prefer an exact divisor: no padding
        if t % cand == 0:
            return cand, t
    tblk = cap                                   # fallback: fixed big block + padding
    tpad = ((t + tblk - 1) // tblk) * tblk
    return tblk, tpad


def vdiffusion_loss(x, noise, sigmas, w, bias, *, cast_bf16=True):
    """Pallas TPU implementation of VDiffusion.forward's loss computation.

    x, noise : (B, C, T) float32
    sigmas   : (B,)      float32
    w        : (C, C)    float32   (1x1 conv weight of the synthetic net)
    bias     : (C, 1)    float32
    returns  : scalar float32 loss
    """
    B, C, T = x.shape
    total_elems = B * C * T

    tblk, t_pad = _pick_block(T)
    # Guarantee >= 2 grid blocks so v7x's two TensorCores both get work.
    if B * (t_pad // tblk) < 2 and tblk % 256 == 0:
        tblk //= 2
    num_tblk = t_pad // tblk
    needs_mask = (t_pad != T)

    in_dtype = jnp.bfloat16 if cast_bf16 else x.dtype
    x_in = x.astype(in_dtype)
    n_in = noise.astype(in_dtype)
    if needs_mask:
        pad = t_pad - T
        x_in = jnp.pad(x_in, ((0, 0), (0, 0), (0, pad)))
        n_in = jnp.pad(n_in, ((0, 0), (0, 0), (0, pad)))

    # Tiny per-batch conditioning table -> SMEM (no (1, N) rows streamed).
    angle = sigmas.astype(jnp.float32) * (math.pi / 2.0)
    coef = jnp.stack(
        [jnp.cos(angle), jnp.sin(angle), sigmas.astype(jnp.float32)], axis=0
    )  # (3, B)

    kernel = functools.partial(
        _vdiffusion_kernel, t_true=T, tblk=tblk, mask_cols=needs_mask
    )

    grid_spec = pltpu.PrefetchScalarGridSpec(
        num_scalar_prefetch=0,
        grid=(B, num_tblk),
        in_specs=[
            pl.BlockSpec(memory_space=pltpu.MemorySpace.SMEM),         # coef (3, B)
            pl.BlockSpec((None, C, tblk), lambda b, j: (b, 0, j)),     # x  (native layout)
            pl.BlockSpec((None, C, tblk), lambda b, j: (b, 0, j)),     # noise
            pl.BlockSpec((C, C), lambda b, j: (0, 0)),                 # conv weight (resident)
            pl.BlockSpec((C, 1), lambda b, j: (0, 0)),                 # conv bias   (resident)
        ],
        out_specs=pl.BlockSpec((None, 8, 128), lambda b, j: (b, j, 0)),  # partial tiles
    )

    itemsize = jnp.dtype(in_dtype).itemsize
    bytes_accessed = (
        2 * B * C * t_pad * itemsize          # x + noise streams
        + (C * C + C) * 4                     # weight + bias
        + 3 * B * 4                           # coef table
        + B * num_tblk * 8 * 128 * 4          # partials out
    )

    partials = pl.pallas_call(
        kernel,
        out_shape=jax.ShapeDtypeStruct((B, num_tblk * 8, 128), jnp.float32),
        grid_spec=grid_spec,
        compiler_params=pltpu.CompilerParams(
            dimension_semantics=("parallel", "parallel"),
            vmem_limit_bytes=32 * 1024 * 1024,
        ),
        cost_estimate=pl.CostEstimate(
            flops=2 * C * C * B * t_pad,
            transcendentals=0,
            bytes_accessed=bytes_accessed,
        ),
    )(coef, x_in, n_in, w.astype(jnp.float32), bias.astype(jnp.float32))

    # Tiny external reduction over num_blocks * 1024 floats.
    return jnp.sum(partials) / total_elems


def vdiffusion_loss_ref(x, noise, sigmas, w, bias):
    """Plain-JAX reference, mirrors the PyTorch forward semantics."""
    alphas = jnp.cos(sigmas * math.pi / 2.0)[:, None, None]
    betas = jnp.sin(sigmas * math.pi / 2.0)[:, None, None]
    x_noisy = alphas * x + betas * noise
    v_target = alphas * noise - betas * x
    v_pred = (
        jnp.einsum("oc,bct->bot", w, x_noisy)
        + bias[None, :, :]
        + sigmas[:, None, None]
    )
    return jnp.mean((v_pred - v_target) ** 2)


if __name__ == "__main__":
    B, C, T = 2, 8, 128

    key = jax.random.PRNGKey(0)
    k_x, k_noise, k_sigma, k_w, k_b, k_proj = jax.random.split(key, 6)

    x = jax.random.normal(k_x, (B, C, T), dtype=jnp.float32)

    # PyTorch forward samples these internally; we sample them deterministically
    # here and pass them in (glue outside the kernel).
    noise = jax.random.normal(k_noise, (B, C, T), dtype=jnp.float32)   # randn_like(x)
    sigmas = jax.random.uniform(k_sigma, (B,), dtype=jnp.float32)      # UniformDistribution()

    # Synthetic net parameters: pointwise Conv1d(C, C, 1), kaiming-normal init.
    w = jax.random.normal(k_w, (C, C), dtype=jnp.float32) * math.sqrt(2.0 / C)
    bias = jnp.zeros((C, 1), dtype=jnp.float32)

    # input_projection = Conv1d(2, 1, 1) from __init__ — initialized for parity,
    # but (exactly as in the PyTorch forward) never used.
    # TODO(synk): input_projection is dead code in the reference forward; not applied.
    _input_projection_w = (
        jax.random.normal(k_proj, (1, 2, 1), dtype=jnp.float32) * math.sqrt(2.0 / 2.0)
    )

    # Path 1: T a multiple of 128 (no padding / no masking).
    loss = jax.block_until_ready(vdiffusion_loss(x, noise, sigmas, w, bias))
    loss_ref = vdiffusion_loss_ref(x, noise, sigmas, w, bias)
    np.testing.assert_allclose(np.asarray(loss), np.asarray(loss_ref), rtol=2e-2, atol=2e-2)

    # Path 2: T not a multiple of 128 (exercises padding + in-kernel masking).
    T2 = 200
    x2 = jax.random.normal(k_x, (B, C, T2), dtype=jnp.float32)
    n2 = jax.random.normal(k_noise, (B, C, T2), dtype=jnp.float32)
    loss2 = jax.block_until_ready(vdiffusion_loss(x2, n2, sigmas, w, bias))
    loss2_ref = vdiffusion_loss_ref(x2, n2, sigmas, w, bias)
    np.testing.assert_allclose(np.asarray(loss2), np.asarray(loss2_ref), rtol=2e-2, atol=2e-2)

    print("KERNEL_OK")
</pallas_src>

<mosaic_0001>
module attributes {stable_mosaic.version = 11 : i64} {
  func.func @_vdiffusion_kernel(%arg0: i32, %arg1: i32, %arg2: memref<3x2xf32, #tpu.memory_space<smem>>, %arg3: memref<1x8x128xbf16, #tpu.memory_space<vmem>>, %arg4: memref<1x8x128xbf16, #tpu.memory_space<vmem>>, %arg5: memref<8x8xf32, #tpu.memory_space<vmem>>, %arg6: memref<8x1xf32, #tpu.memory_space<vmem>>, %arg7: memref<1x8x128xf32, #tpu.memory_space<vmem>>) attributes {dimension_semantics = [#tpu.dimension_semantics<parallel>, #tpu.dimension_semantics<parallel>], iteration_bounds = array<i64: 2, 1>, scalar_prefetch = 0 : i64, scratch_operands = 0 : i64, tpu.core_type = #tpu.core_type<tc>, window_params = [{transform_indices = @transform_0, window_bounds = array<i64: 3, 2>}, {transform_indices = @transform_1, window_bounds = array<i64: 1, 8, 128>}, {transform_indices = @transform_2, window_bounds = array<i64: 1, 8, 128>}, {pipeline_mode = #tpu.pipeline_mode<synchronous>, transform_indices = @transform_3, window_bounds = array<i64: 8, 8>}, {pipeline_mode = #tpu.pipeline_mode<synchronous>, transform_indices = @transform_4, window_bounds = array<i64: 8, 1>}, {transform_indices = @transform_5, window_bounds = array<i64: 1, 8, 128>}]} {
    %c0 = arith.constant 0 : index
    %0 = arith.index_cast %arg0 : i32 to index
    %1 = memref.load %arg2[%c0, %0] : memref<3x2xf32, #tpu.memory_space<smem>>
    %c1 = arith.constant 1 : index
    %2 = arith.index_cast %arg0 : i32 to index
    %3 = memref.load %arg2[%c1, %2] : memref<3x2xf32, #tpu.memory_space<smem>>
    %c2 = arith.constant 2 : index
    %4 = arith.index_cast %arg0 : i32 to index
    %5 = memref.load %arg2[%c2, %4] : memref<3x2xf32, #tpu.memory_space<smem>>
    %c0_0 = arith.constant 0 : index
    %c0_1 = arith.constant 0 : index
    %c0_2 = arith.constant 0 : index
    %6 = vector.load %arg3[%c0_0, %c0_1, %c0_2] : memref<1x8x128xbf16, #tpu.memory_space<vmem>>, vector<1x8x128xbf16>
    %7 = vector.shape_cast %6 : vector<1x8x128xbf16> to vector<8x128xbf16>
    %8 = arith.extf %7 : vector<8x128xbf16> to vector<8x128xf32>
    %c0_3 = arith.constant 0 : index
    %c0_4 = arith.constant 0 : index
    %c0_5 = arith.constant 0 : index
    %9 = vector.load %arg4[%c0_3, %c0_4, %c0_5] : memref<1x8x128xbf16, #tpu.memory_space<vmem>>, vector<1x8x128xbf16>
    %10 = vector.shape_cast %9 : vector<1x8x128xbf16> to vector<8x128xbf16>
    %11 = arith.extf %10 : vector<8x128xbf16> to vector<8x128xf32>
    %12 = vector.broadcast %1 : f32 to vector<8x128xf32>
    %13 = arith.mulf %12, %8 : vector<8x128xf32>
    %14 = vector.broadcast %3 : f32 to vector<8x128xf32>
    %15 = arith.mulf %14, %11 : vector<8x128xf32>
    %16 = arith.addf %13, %15 : vector<8x128xf32>
    %17 = vector.broadcast %1 : f32 to vector<8x128xf32>
    %18 = arith.mulf %17, %11 : vector<8x128xf32>
    %19 = vector.broadcast %3 : f32 to vector<8x128xf32>
    %20 = arith.mulf %19, %8 : vector<8x128xf32>
    %21 = arith.subf %18, %20 : vector<8x128xf32>
    %c0_6 = arith.constant 0 : index
    %c0_7 = arith.constant 0 : index
    %22 = vector.load %arg5[%c0_6, %c0_7] : memref<8x8xf32, #tpu.memory_space<vmem>>, vector<8x8xf32>
    %cst = arith.constant dense<0.000000e+00> : vector<8x128xf32>
    %23 = tpu.matmul %22, %16, %cst {dimension_numbers = #tpu.dot_dimension_numbers<[1], [0], [0], [1], [0, 0, 1, 1], [], []>} : vector<8x8xf32>, vector<8x128xf32>, vector<8x128xf32> -> vector<8x128xf32>
    %c0_8 = arith.constant 0 : index
    %c0_9 = arith.constant 0 : index
    %24 = vector.load %arg6[%c0_8, %c0_9] : memref<8x1xf32, #tpu.memory_space<vmem>>, vector<8x1xf32>
    %25 = vector.broadcast %24 : vector<8x1xf32> to vector<8x128xf32>
    %26 = arith.addf %23, %25 : vector<8x128xf32>
    %27 = vector.broadcast %5 : f32 to vector<8x128xf32>
    %28 = arith.addf %26, %27 : vector<8x128xf32>
    %29 = arith.subf %28, %21 : vector<8x128xf32>
    %30 = arith.mulf %29, %29 : vector<8x128xf32>
    %cst_10 = arith.constant dense<0.000000e+00> : vector<128xf32>
    %31 = vector.multi_reduction <add>, %30, %cst_10 [0] : vector<8x128xf32> to vector<128xf32>
    %32 = vector.shape_cast %31 : vector<128xf32> to vector<1x128xf32>
    %cst_11 = arith.constant dense<0.000000e+00> : vector<128xf32>
    %33 = vector.multi_reduction <add>, %32, %cst_11 [0] : vector<1x128xf32> to vector<128xf32>
    %34 = vector.shape_cast %33 : vector<128xf32> to vector<1x128xf32>
    %cst_12 = arith.constant 1.250000e-01 : f32
    %35 = vector.broadcast %cst_12 : f32 to vector<1x128xf32>
    %36 = arith.mulf %34, %35 : vector<1x128xf32>
    %37 = vector.shape_cast %36 : vector<1x128xf32> to vector<1x128xf32>
    %38 = vector.broadcast %37 : vector<1x128xf32> to vector<8x128xf32>
    %c0_13 = arith.constant 0 : index
    %c0_14 = arith.constant 0 : index
    %c0_15 = arith.constant 0 : index
    %39 = vector.load %arg7[%c0_13, %c0_14, %c0_15] : memref<1x8x128xf32, #tpu.memory_space<vmem>>, vector<1x8x128xf32>
    %40 = vector.shape_cast %39 : vector<1x8x128xf32> to vector<8x128xf32>
    %41 = vector.shape_cast %38 : vector<8x128xf32> to vector<1x8x128xf32>
    tpu.vector_store %arg7[%c0_13, %c0_14, %c0_15], %41 {strides = array<i32>} : memref<1x8x128xf32, #tpu.memory_space<vmem>>, vector<1x8x128xf32>,
    return
  }
  func.func @transform_0(%arg0: i32, %arg1: i32) -> (i32, i32) {
    %c0_i32 = arith.constant 0 : i32
    %c0_i32_0 = arith.constant 0 : i32
    %c0_i32_1 = arith.constant 0 : i32
    return %c0_i32, %c0_i32_0 : i32, i32
  }
  func.func @transform_1(%arg0: i32, %arg1: i32) -> (i32, i32, i32) {
    %c0_i32 = arith.constant 0 : i32
    %c0_i32_0 = arith.constant 0 : i32
    return %arg0, %c0_i32, %arg1 : i32, i32, i32
  }
  func.func @transform_2(%arg0: i32, %arg1: i32) -> (i32, i32, i32) {
    %c0_i32 = arith.constant 0 : i32
    %c0_i32_0 = arith.constant 0 : i32
    return %arg0, %c0_i32, %arg1 : i32, i32, i32
  }
  func.func @transform_3(%arg0: i32, %arg1: i32) -> (i32, i32) {
    %c0_i32 = arith.constant 0 : i32
    %c0_i32_0 = arith.constant 0 : i32
    %c0_i32_1 = arith.constant 0 : i32
    return %c0_i32, %c0_i32_0 : i32, i32
  }
  func.func @transform_4(%arg0: i32, %arg1: i32) -> (i32, i32) {
    %c0_i32 = arith.constant 0 : i32
    %c0_i32_0 = arith.constant 0 : i32
    %c0_i32_1 = arith.constant 0 : i32
    return %c0_i32, %c0_i32_0 : i32, i32
  }
  func.func @transform_5(%arg0: i32, %arg1: i32) -> (i32, i32, i32) {
    %c0_i32 = arith.constant 0 : i32
    %c0_i32_0 = arith.constant 0 : i32
    return %arg0, %arg1, %c0_i32 : i32, i32, i32
  }
}

</mosaic_0001>

<llo_original>
// kernel: tpu_custom_call.1
$region0: #{tpu_custom_call.1}
  #allocation0 [shape = 'u32[]', space=smem, size = 0x4, offset = 0x4, fixed_abs, tag = 'smem constant byte address 0x4 - core index']
  #allocation1 [shape = 'u32[144,128]{1,0:T(1,128)}', space=vmem, size = 0x12000, scoped, tag = 'internal scratch']
  %s0 = inlined_call_operand.vmem [shape: f32[3,2], index: 0, kind: input, shape index: {}]
  %s1 = inlined_call_operand.vmem [shape: bf16[2,8,128], index: 1, kind: input, shape index: {}]
  %s2 = inlined_call_operand.vmem [shape: bf16[2,8,128], index: 2, kind: input, shape index: {}]
  %s3 = inlined_call_operand.vmem [shape: f32[8,8], index: 3, kind: input, shape index: {}]
  %s4 = inlined_call_operand.vmem [shape: f32[8,1], index: 4, kind: input, shape index: {}]
  %s5 = inlined_call_operand.hbm [shape: f32[2,8,128], index: 5, kind: output, shape index: {}]
  %s6 = sld [smem:[#allocation0]]
  $region57: #{tpu_custom_call.1} parent=0
    _
  %s8 = ssub.s32 1, %s6
  %s9 = scalar_select 0, %s8, %s6
  $region1: #{tpu_custom_call.1} parent=0
    #allocation2 [shape = 'u8[2048]{0}', space=smem, size = 0x800, scoped, tag = 'input window, operand 0, single buffered']
    #allocation3 [shape = 's32[2]{0}', space=sflag, size = 0x8, scoped, tag = 'scoped memory for tpu_custom_call.1']
    #allocation4 [shape = 's32[2]{0}', space=sflag, size = 0x8, scoped, tag = 'scoped memory for tpu_custom_call.1']
    #allocation5 [shape = 'u8[8192]{0}', space=vmem, size = 0x2000, scoped, tag = 'output window, operand 0']
    %10 = vsyncpa [#allocation4], 0
    %11 = vsyncpa [#allocation3], 0
    %s12 = scalar_lea.sflag [#allocation3], 1
    %13 = vsyncpa %s12, 0
    loop: start=0, step=1, limit=4
    $region2: #{tpu_custom_call.1} parent=1 // loop_pre_header
      _
    $region3: #{tpu_custom_call.1} parent=1 // loop_header
      %s15 = sphi 0, %s19
      %p16 = scmp.ge.s32.totalorder %s15, 4
      %s22 = sphi 0, %s34
      %s23 = sphi 0, %s30
      %s24 = sphi 0, %s22
      %s25 = sphi 0, %s23
      %s26 = sphi 0, %s24
      %s27 = sphi 0, %s25
      %s35 = sphi 0, %s35
      %s37 = sphi 0, %s35
      %s38 = sphi 0, %s37
      %s52 = sphi 0, %s38
      %s60 = sphi 0, %s62
      %s63 = sphi 0, %s60
      %s64 = sphi 0, %s63
      %s80 = sphi 0, %s64
      %s88 = sphi 0, %s90
      %s91 = sphi 0, %s88
      %s92 = sphi 0, %s91
      %s108 = sphi 0, %s92
      %s112 = sphi 0, %s112
      %s114 = sphi 0, %s112
      %s115 = sphi 0, %s114
      %s129 = sphi 0, %s115
      %s133 = sphi 0, %s133
      %s135 = sphi 0, %s133
      %s136 = sphi 0, %s135
      %s150 = sphi 0, %s136
      %s158 = sphi 0, %s160
      %s161 = sphi 0, %s158
      %s162 = sphi 0, %s161
      %s178 = sphi 0, %s162
    $region4: #{tpu_custom_call.1} parent=1 // loop_header_branch
      %18 = sbr.rel (%p16) target = $region8
    $region5: #{tpu_custom_call.1} parent=1 // loop_body
      %s20 = ssub.s32 %s15, 1
      %s21 = ssub.s32 %s15, 2
      %s28 = sadd.s32 1, %s23
      %p29 = scmp.ge.s32.totalorder %s28, 1
      %s30 = scalar_select %p29, 0, %s28
      %s31 = sadd.s32 1, %s22
      %s32 = scalar_select %p29, %s31, %s22
      %p33 = scmp.ge.s32.totalorder %s32, 2
      %s34 = scalar_select %p33, 0, %s32
      %s36 = sadd.s32 %s35, 1
      %p39 = scmp.eq.s32.totalorder %s15, 1
      %p40 = scmp.ne.s32.totalorder %s35, %s37
      %p41 = scmp.eq.s32.totalorder %s15, 0
      %p42 = por %p40, %p41
      %p43 = scmp.ne.s32.totalorder %s35, %s37
      %p44 = scmp.eq.s32.totalorder %s20, 1
      %p45 = por %p43, %p44
      %p46 = scmp.ne.s32.totalorder %s37, %s38
      %p47 = scmp.eq.s32.totalorder %s20, 0
      %p48 = por %p46, %p47
      %p49 = scmp.ne.s32.totalorder %s37, %s38
      %p50 = scmp.eq.s32.totalorder %s21, 1
      %p51 = por %p49, %p50
      %p53 = scmp.ne.s32.totalorder %s38, %s52
      %p54 = scmp.eq.s32.totalorder %s21, 0
      %p55 = por %p53, %p54
      %s56 = ssub.s32 %s22, %s34
      %s57 = ssub.s32 %s23, %s30
      %s58 = sor.u32 %s56, %s57
      %p59 = scmp.eq.s32.totalorder %s58, 0
      %s61 = sadd.s32 %s60, 1
      %s62 = scalar_select %p59, %s60, %s61
      %p65 = pneg %p59
      %p66 = scmp.eq.s32.totalorder %s15, 1
      %p67 = por %p65, %p66
      %p68 = scmp.ne.s32.totalorder %s60, %s63
      %p69 = scmp.eq.s32.totalorder %s15, 0
      %p70 = por %p68, %p69
      %p71 = scmp.ne.s32.totalorder %s60, %s63
      %p72 = scmp.eq.s32.totalorder %s20, 1
      %p73 = por %p71, %p72
      %p74 = scmp.ne.s32.totalorder %s63, %s64
      %p75 = scmp.eq.s32.totalorder %s20, 0
      %p76 = por %p74, %p75
      %p77 = scmp.ne.s32.totalorder %s63, %s64
      %p78 = scmp.eq.s32.totalorder %s21, 1
      %p79 = por %p77, %p78
      %p81 = scmp.ne.s32.totalorder %s64, %s80
      %p82 = scmp.eq.s32.totalorder %s21, 0
      %p83 = por %p81, %p82
      %s84 = ssub.s32 %s22, %s34
      %s85 = ssub.s32 %s23, %s30
      %s86 = sor.u32 %s84, %s85
      %p87 = scmp.eq.s32.totalorder %s86, 0
      %s89 = sadd.s32 %s88, 1
      %s90 = scalar_select %p87, %s88, %s89
      %p93 = pneg %p87
      %p94 = scmp.eq.s32.totalorder %s15, 1
      %p95 = por %p93, %p94
      %p96 = scmp.ne.s32.totalorder %s88, %s91
      %p97 = scmp.eq.s32.totalorder %s15, 0
      %p98 = por %p96, %p97
      %p99 = scmp.ne.s32.totalorder %s88, %s91
      %p100 = scmp.eq.s32.totalorder %s20, 1
      %p101 = por %p99, %p100
      %p102 = scmp.ne.s32.totalorder %s91, %s92
      %p103 = scmp.eq.s32.totalorder %s20, 0
      %p104 = por %p102, %p103
      %p105 = scmp.ne.s32.totalorder %s91, %s92
      %p106 = scmp.eq.s32.totalorder %s21, 1
      %p107 = por %p105, %p106
      %p109 = scmp.ne.s32.totalorder %s92, %s108
      %p110 = scmp.eq.s32.totalorder %s21, 0
      %p111 = por %p109, %p110
      %s113 = sadd.s32 %s112, 1
      %p116 = scmp.eq.s32.totalorder %s15, 1
      %p117 = scmp.ne.s32.totalorder %s112, %s114
      %p118 = scmp.eq.s32.totalorder %s15, 0
      %p119 = por %p117, %p118
      %p120 = scmp.ne.s32.totalorder %s112, %s114
      %p121 = scmp.eq.s32.totalorder %s20, 1
      %p122 = por %p120, %p121
      %p123 = scmp.ne.s32.totalorder %s114, %s115
      %p124 = scmp.eq.s32.totalorder %s20, 0
      %p125 = por %p123, %p124
      %p126 = scmp.ne.s32.totalorder %s114, %s115
      %p127 = scmp.eq.s32.totalorder %s21, 1
      %p128 = por %p126, %p127
      %p130 = scmp.ne.s32.totalorder %s115, %s129
      %p131 = scmp.eq.s32.totalorder %s21, 0
      %p132 = por %p130, %p131
      %s134 = sadd.s32 %s133, 1
      %p137 = scmp.eq.s32.totalorder %s15, 1
      %p138 = scmp.ne.s32.totalorder %s133, %s135
      %p139 = scmp.eq.s32.totalorder %s15, 0
      %p140 = por %p138, %p139
      %p141 = scmp.ne.s32.totalorder %s133, %s135
      %p142 = scmp.eq.s32.totalorder %s20, 1
      %p143 = por %p141, %p142
      %p144 = scmp.ne.s32.totalorder %s135, %s136
      %p145 = scmp.eq.s32.totalorder %s20, 0
      %p146 = por %p144, %p145
      %p147 = scmp.ne.s32.totalorder %s135, %s136
      %p148 = scmp.eq.s32.totalorder %s21, 1
      %p149 = por %p147, %p148
      %p151 = scmp.ne.s32.totalorder %s136, %s150
      %p152 = scmp.eq.s32.totalorder %s21, 0
      %p153 = por %p151, %p152
      %s154 = ssub.s32 %s22, %s34
      %s155 = ssub.s32 %s23, %s30
      %s156 = sor.u32 %s154, %s155
      %p157 = scmp.eq.s32.totalorder %s156, 0
      %s159 = sadd.s32 %s158, 1
      %s160 = scalar_select %p157, %s158, %s159
      %p163 = pneg %p157
      %p164 = scmp.eq.s32.totalorder %s15, 1
      %p165 = por %p163, %p164
      %p166 = scmp.ne.s32.totalorder %s158, %s161
      %p167 = scmp.eq.s32.totalorder %s15, 0
      %p168 = por %p166, %p167
      %p169 = scmp.ne.s32.totalorder %s158, %s161
      %p170 = scmp.eq.s32.totalorder %s20, 1
      %p171 = por %p169, %p170
      %p172 = scmp.ne.s32.totalorder %s161, %s162
      %p173 = scmp.eq.s32.totalorder %s20, 0
      %p174 = por %p172, %p173
      %p175 = scmp.ne.s32.totalorder %s161, %s162
      %p176 = scmp.eq.s32.totalorder %s21, 1
      %p177 = por %p175, %p176
      %p179 = scmp.ne.s32.totalorder %s162, %s178
      %p180 = scmp.eq.s32.totalorder %s21, 0
      %p181 = por %p179, %p180
      %p182 = scmp.le.s32.totalorder 1, %s15
      %p183 = scmp.lt.s32.totalorder %s15, 3
      %p184 = pnand %p182, %p183
      %p185 = pneg %p184
      // Predicated region
      $region9: #{tpu_custom_call.1} parent=5 // pred_check
        _
      $region10: #{tpu_custom_call.1} parent=5 // pred_check_branch
        %187 = sbr.rel (%p184) target = $region12
      $region11: #{tpu_custom_call.1} parent=5 // pred_region
        %s188 = ssub.s32 %s15, 1
        // Predicated region
        $region13: #{tpu_custom_call.1} parent=11 // pred_check
          %p189 = pneg %p48
        $region14: #{tpu_custom_call.1} parent=11 // pred_check_branch
          %191 = sbr.rel (%p189) target = $region16
        $region15: #{tpu_custom_call.1} parent=11 // pred_region
          %s193 = ssub.s32 64, 64
          %194 = vsyncadd [#allocation4], %s193
          %s196 = sshll.u32 %s0, 4
          %s197 = int_to_ptr.vmem [resolvable:$true] %s196
          %199 = dma.vmem_to_smem %s197, 64, [#allocation2], [#allocation4]
        $region16: #{tpu_custom_call.1} parent=11 // pred_fallthru
          _
        // Predicated region
        $region17: #{tpu_custom_call.1} parent=11 // pred_check
          %p200 = pneg %p125
        $region18: #{tpu_custom_call.1} parent=11 // pred_check_branch
          %202 = sbr.rel (%p200) target = $region20
        $region19: #{tpu_custom_call.1} parent=11 // pred_region
          _
        $region20: #{tpu_custom_call.1} parent=11 // pred_fallthru
          _
        // Predicated region
        $region21: #{tpu_custom_call.1} parent=11 // pred_check
          %p203 = pneg %p146
        $region22: #{tpu_custom_call.1} parent=11 // pred_check_branch
          %205 = sbr.rel (%p203) target = $region24
        $region23: #{tpu_custom_call.1} parent=11 // pred_region
          _
        $region24: #{tpu_custom_call.1} parent=11 // pred_fallthru
          _
      $region12: #{tpu_custom_call.1} parent=5 // pred_fallthru
        _
      %p206 = scmp.lt.s32.totalorder %s15, 2
      // Predicated region
      $region25: #{tpu_custom_call.1} parent=5 // pred_check
        %p207 = pneg %p206
      $region26: #{tpu_custom_call.1} parent=5 // pred_check_branch
        %209 = sbr.rel (%p207) target = $region28
      $region27: #{tpu_custom_call.1} parent=5 // pred_region
        // Predicated region
        $region29: #{tpu_custom_call.1} parent=27 // pred_check
          %p210 = pneg %p70
        $region30: #{tpu_custom_call.1} parent=27 // pred_check_branch
          %212 = sbr.rel (%p210) target = $region32
        $region31: #{tpu_custom_call.1} parent=27 // pred_region
          %p213 = scmp.lt.s32.totalorder %s22, 1
          %s214 = scalar_select %p213, %s22, 1
          %p215 = scmp.lt.s32.totalorder %s23, 0
          %s216 = scalar_select %p215, %s23, 0
          %s217 = sadd.s32 %s216, %s214
          %s218 = smul.addr %s217, 4
          %s219 = scalar_lea.vmem %s1, %s218
        $region32: #{tpu_custom_call.1} parent=27 // pred_fallthru
          _
        // Predicated region
        $region33: #{tpu_custom_call.1} parent=27 // pred_check
          %p220 = pneg %p98
        $region34: #{tpu_custom_call.1} parent=27 // pred_check_branch
          %222 = sbr.rel (%p220) target = $region36
        $region35: #{tpu_custom_call.1} parent=27 // pred_region
          %p223 = scmp.lt.s32.totalorder %s22, 1
          %s224 = scalar_select %p223, %s22, 1
          %p225 = scmp.lt.s32.totalorder %s23, 0
          %s226 = scalar_select %p225, %s23, 0
          %s227 = sadd.s32 %s226, %s224
          %s228 = smul.addr %s227, 4
          %s229 = scalar_lea.vmem %s2, %s228
        $region36: #{tpu_custom_call.1} parent=27 // pred_fallthru
          _
      $region28: #{tpu_custom_call.1} parent=5 // pred_fallthru
        _
      %p230 = scmp.le.s32.totalorder 1, %s15
      %p231 = scmp.lt.s32.totalorder %s15, 3
      %p232 = pnand %p230, %p231
      %p233 = pneg %p232
      // Predicated region
      $region37: #{tpu_custom_call.1} parent=5 // pred_check
        _
      $region38: #{tpu_custom_call.1} parent=5 // pred_check_branch
        %235 = sbr.rel (%p232) target = $region40
      $region39: #{tpu_custom_call.1} parent=5 // pred_region
        %s236 = ssub.s32 %s15, 1
        // Predicated region
        $region41: #{tpu_custom_call.1} parent=39 // pred_check
          %p237 = pneg %p48
        $region42: #{tpu_custom_call.1} parent=39 // pred_check_branch
          %239 = sbr.rel (%p237) target = $region44
        $region43: #{tpu_custom_call.1} parent=39 // pred_region
          %240 = dma.done [#allocation4], 64
        $region44: #{tpu_custom_call.1} parent=39 // pred_fallthru
          _
        %241 = sfence
        %p242 = pneg %p48
        %p243 = pneg %p45
        %p244 = scmp.lt.s32.totalorder %s24, 1
        %s245 = scalar_select %p244, %s24, 1
        %p246 = scmp.lt.s32.totalorder %s25, 0
        %s247 = scalar_select %p246, %s25, 0
        %s248 = sadd.s32 %s247, %s245
        %s249 = smul.addr %s248, 4
        %s250 = scalar_lea.vmem %s1, %s249
        %p251 = pneg %p76
        %p252 = pneg %p73
        %p253 = scmp.lt.s32.totalorder %s24, 1
        %s254 = scalar_select %p253, %s24, 1
        %p255 = scmp.lt.s32.totalorder %s25, 0
        %s256 = scalar_select %p255, %s25, 0
        %s257 = sadd.s32 %s256, %s254
        %s258 = smul.addr %s257, 4
        %s259 = scalar_lea.vmem %s2, %s258
        %p260 = pneg %p104
        %p261 = pneg %p101
        %p262 = pneg %p125
        %p263 = pneg %p122
        %p264 = pneg %p146
        %p265 = pneg %p143
        %p266 = pneg %p174
        %p267 = pneg %p171
        %s268 = sand.u32 %s161, 1
        %s269 = scalar_lea.sflag [#allocation3], %s268
        %s270 = sand.u32 %s161, 1
        %s271 = smul.addr %s270, 8
        %s272 = scalar_lea.vmem [#allocation5], %s271
        %p273 = scmp.lt.s32.totalorder %s24, 1
        %s274 = scalar_select %p273, %s24, 1
        %p275 = scmp.lt.s32.totalorder %s25, 0
        %s276 = scalar_select %p275, %s25, 0
        %s277 = sadd.s32 %s276, %s274
        %s278 = smul.addr %s277, 4
        %s279 = scalar_lea.vmem %s1, %s278
        %p280 = scmp.lt.s32.totalorder %s24, 1
        %s281 = scalar_select %p280, %s24, 1
        %p282 = scmp.lt.s32.totalorder %s25, 0
        %s283 = scalar_select %p282, %s25, 0
        %s284 = sadd.s32 %s283, %s281
        %s285 = smul.addr %s284, 4
        %s286 = scalar_lea.vmem %s2, %s285
        %s287 = sld [smem:[#allocation2 + %s24]]
        %s288 = sshra.s32 %s24, 7
        %s289 = sand.u32 %s24, 127
        %s290 = sadd.s32 %s288, 1
        %s291 = smul.u32 %s290, 128
        %s292 = sshra.s32 %s24, 7
        %s293 = sand.u32 %s24, 127
        %s294 = sadd.s32 %s291, %s293
        %s295 = sld [smem:[#allocation2 + %s294]]
        %s296 = sadd.s32 %s288, 2
        %s297 = smul.u32 %s296, 128
        %s298 = sadd.s32 %s297, %s293
        %s299 = sld [smem:[#allocation2 + %s298]]
        %v300 = vld [vmem:[%s279] sm:$0xf]
        %v301 = vunpack.c.l.bf16 %v300
        %v302 = vld [vmem:[%s286] sm:$0xf]
        %v303 = vunpack.c.l.bf16 %v302
        %v304 = vstv %s287
        %v305 = vmul.f32 %v304, %v301
        %v306 = vstv %s295
        %v307 = vmul.f32 %v306, %v303
        %v308 = vadd.f32 %v305, %v307
        %v309 = vmul.f32 %v304, %v303
        %v310 = vmul.f32 %v306, %v301
        %v311 = vsub.f32 %v309, %v310
        %v312 = vld [vmem:[%s3] sm:$0xff]
        %v313 = vld [vmem:[%s4] sm:$0xff]
        %315 = vset.pattern.permute.xlu0 0
        %316 = vperm.xlu0 %315, %v313
        %v317 = vpop.permute.xlu0 %316
        %vm319 = vcmask 64512
        %v321 = vsel %vm319, %v312, 0
        %323 = vmatprep.subr.mxu0 0.0
        %324 = vmatpush1.msra.mxu0 %v308
        %325 = vmatprep.subr.mxu0 0.0
        %326 = vmatpush1.msra.mxu0 0.0
        %327 = vmatprep.subr.mxu0 0.0
        %328 = vmatpush1.msra.mxu0 0.0
        %329 = vmatprep.subr.mxu0 0.0
        %330 = vmatpush1.msra.mxu0 0.0
        %331 = vmatprep.subr.mxu0 0.0
        %332 = vmatpush1.msra.mxu0 0.0
        %333 = vmatprep.subr.mxu0 0.0
        %334 = vmatpush1.msra.mxu0 0.0
        %335 = vmatprep.subr.mxu0 0.0
        %336 = vmatpush1.msra.mxu0 0.0
        %337 = vmatprep.subr.mxu0 0.0
        %338 = vmatpush1.msra.mxu0 0.0
        %339 = vmatprep.subr.mxu0 0.0
        %340 = vmatpush1.msra.mxu0 0.0
        %341 = vmatprep.subr.mxu0 0.0
        %342 = vmatpush1.msra.mxu0 0.0
        %343 = vmatprep.subr.mxu0 0.0
        %344 = vmatpush1.msra.mxu0 0.0
        %345 = vmatprep.subr.mxu0 0.0
        %346 = vmatpush1.msra.mxu0 0.0
        %347 = vmatprep.subr.mxu0 0.0
        %348 = vmatpush1.msra.mxu0 0.0
        %349 = vmatprep.subr.mxu0 0.0
        %350 = vmatpush1.msra.mxu0 0.0
        %351 = vmatprep.subr.mxu0 0.0
        %352 = vmatpush1.msra.mxu0 0.0
        %353 = vmatprep.subr.mxu0 0.0
        %354 = vmatpush1.msra.mxu0 0.0
        %355 = vmatprep.subr.mxu0 0.0
        %356 = vmatpush1.msra.mxu0 0.0
        %357 = vmatprep.subr.mxu0 0.0
        %358 = vmatpush1.msra.mxu0 0.0
        %359 = vmatprep.subr.mxu0 0.0
        %360 = vmatpush1.msra.mxu0 0.0
        %361 = vmatprep.subr.mxu0 0.0
        %362 = vmatpush1.msra.mxu0 0.0
        %363 = vmatprep.subr.mxu0 0.0
        %364 = vmatpush1.msra.mxu0 0.0
        %365 = vmatprep.subr.mxu0 0.0
        %366 = vmatpush1.msra.mxu0 0.0
        %367 = vmatprep.subr.mxu0 0.0
        %368 = vmatpush1.msra.mxu0 0.0
        %369 = vmatprep.subr.mxu0 0.0
        %370 = vmatpush1.msra.mxu0 0.0
        %371 = vmatprep.subr.mxu0 0.0
        %372 = vmatpush1.msra.mxu0 0.0
        %373 = vmatprep.subr.mxu0 0.0
        %374 = vmatpush1.msra.mxu0 0.0
        %375 = vmatprep.subr.mxu0 0.0
        %376 = vmatpush1.msra.mxu0 0.0
        %377 = vmatprep.subr.mxu0 0.0
        %378 = vmatpush1.msra.mxu0 0.0
        %379 = vmatprep.subr.mxu0 0.0
        %380 = vmatpush1.msra.mxu0 0.0
        %381 = vmatprep.subr.mxu0 0.0
        %382 = vmatpush1.msra.mxu0 0.0
        %383 = vmatprep.subr.mxu0 0.0
        %384 = vmatpush1.msra.mxu0 0.0
        %385 = vmatprep.subr.mxu0 0.0
        %386 = vmatpush1.msra.mxu0 0.0
        %387 = vmatprep.mubr.f32.mxu0 0.0
        %388 = vmatmul.mubr.f32.gmra.mrb[0].mxu0 %v321
        %v389 = vpop.f32.mrb[0].mxu0
        %v390 = vadd.f32 %v317, %v389
        %v391 = vpop.f32.mrb[0].mxu0
        %392 = vdwg.mxu0
        %v393 = vstv %s299
        %v394 = vadd.f32 %v390, %v393
        %v395 = vsub.f32 %v394, %v311
        %v396 = vmul.f32 %v395, %v395
        %v397 = vrot.slane %v396, 4
        %v398 = vadd.f32 %v396, %v397
        %v399 = vrot.slane %v398, 2
        %v400 = vadd.f32 %v398, %v399
        %v401 = vrot.slane %v400, 1
        %v402 = vadd.f32 %v400, %v401
        %v403 = vadd.f32 %v402, 0.0
        %v404 = vmul.f32 %v403, 0.125
        %405 = vst [vmem:[%s272] sm:$0xff] %v404
        %s406 = sand.u32 %s161, 1
        %s407 = scalar_lea.sflag [#allocation3], %s406
        %s408 = sand.u32 %s161, 1
        %s409 = smul.addr %s408, 8
        %s410 = scalar_lea.vmem [#allocation5], %s409
        // Predicated region
        $region45: #{tpu_custom_call.1} parent=39 // pred_check
          %p411 = pneg %p171
        $region46: #{tpu_custom_call.1} parent=39 // pred_check_branch
          %413 = sbr.rel (%p411) target = $region48
        $region47: #{tpu_custom_call.1} parent=39 // pred_region
          %s415 = ssub.s32 128, 128
          %416 = vsyncadd %s407, %s415
          %s417 = sadd.s32 %s25, %s24
          %s418 = smul.addr %s417, 128
          %s419 = scalar_lea.hbm %s5, %s418
          %s421 = sshll.u32 %s410, 4
          %s422 = int_to_ptr.vmem [resolvable:$true] %s421
          %424 = dma.vmem_to_hbm [thread:$0]  %s422, 128, %s419, %s407
        $region48: #{tpu_custom_call.1} parent=39 // pred_fallthru
          _
      $region40: #{tpu_custom_call.1} parent=5 // pred_fallthru
        _
      %p425 = scmp.le.s32.totalorder 2, %s15
      // Predicated region
      $region49: #{tpu_custom_call.1} parent=5 // pred_check
        %p426 = pneg %p425
      $region50: #{tpu_custom_call.1} parent=5 // pred_check_branch
        %428 = sbr.rel (%p426) target = $region52
      $region51: #{tpu_custom_call.1} parent=5 // pred_region
        %s429 = ssub.s32 %s15, 2
        // Predicated region
        $region53: #{tpu_custom_call.1} parent=51 // pred_check
          %p430 = pneg %p177
        $region54: #{tpu_custom_call.1} parent=51 // pred_check_branch
          %432 = sbr.rel (%p430) target = $region56
        $region55: #{tpu_custom_call.1} parent=51 // pred_region
          %s433 = sand.u32 %s162, 1
          %s434 = scalar_lea.sflag [#allocation3], %s433
          %s435 = sand.u32 %s162, 1
          %s436 = smul.addr %s435, 8
          %s437 = scalar_lea.vmem [#allocation5], %s436
          %438 = dma.done %s434, 128
        $region56: #{tpu_custom_call.1} parent=51 // pred_fallthru
          _
      $region52: #{tpu_custom_call.1} parent=5 // pred_fallthru
        _
    $region6: #{tpu_custom_call.1} parent=1 // loop_footer
      %s19 = sadd.s32 1, %s15
    $region7: #{tpu_custom_call.1} parent=1 // loop_footer_branch
      %14 = sbr.rel target = $region3
    $region8: #{tpu_custom_call.1} parent=1 // loop_exit
      _
    %439 = vsyncpa [#allocation3], 1
    %s440 = scalar_lea.sflag [#allocation3], 1
    %441 = vsyncpa %s440, 1
    %442 = vsyncpa [#allocation4], 1
    %s443 = scalar_lea.sflag [#allocation4], 1
    %444 = vsyncpa %s443, 1

</llo_original>
